<compile_context>
chip_gen: v7x
topology: tpu7x:2x2x1
jax: 0.10.0
libtpu: 0.0.40
codegen_flags: <defaults>
</compile_context>

<pallas_src>
import functools

import jax
import jax.numpy as jnp
from jax.experimental import pallas as pl
from jax.experimental.pallas import tpu as pltpu


def _round_up(x, m):
    return ((x + m - 1) // m) * m


# -----------------------------------------------------------------------------
# Pallas kernel: fused twin-Q MLP + masked mean pooling over a batch block.
# Refs:
#   obs_ref : (TB*S, D_obs) compute_dtype
#   act_ref : (TB*S, A)     compute_dtype
#   m_ref   : (TB*S, 1)     f32 (0/1 mask)
#   w1o_ref : (D_obs, Hp)   compute_dtype   (fused heads on columns)
#   w1a_ref : (A, Hp)       compute_dtype
#   b1_ref  : (1, Hp)       f32
#   w2_ref  : (Hp, Op)      f32             (block-diagonal across heads)
#   b2_ref  : (1, Op)       f32
#   out_ref : (TB, Op)      f32             (both heads, lane-dense)
# -----------------------------------------------------------------------------
def twin_q_kernel(obs_ref, act_ref, m_ref, w1o_ref, w1a_ref, b1_ref,
                  w2_ref, b2_ref, out_ref, *, tb, s):
    # Layer 1: split-input, fused-head matmul with f32 accumulation on the MXU.
    h = jnp.dot(obs_ref[...], w1o_ref[...], preferred_element_type=jnp.float32)
    h = h + jnp.dot(act_ref[...], w1a_ref[...], preferred_element_type=jnp.float32)
    h = jnp.maximum(h + b1_ref[...], 0.0)                     # (TB*S, Hp) f32, VPU

    # Masked sum over the sequence BEFORE layer 2 (linearity of W2/b2 makes this
    # exact): VPU multiply + sublane reduce.  The reshape touches only the small
    # f32 hidden and is a free relayout when S % 8 == 0.
    hm = (h * m_ref[...]).reshape(tb, s, h.shape[-1])          # (TB, S, Hp)
    pooled = jnp.sum(hm, axis=1)                               # (TB, Hp)
    den = jnp.sum(m_ref[...].reshape(tb, s, 1), axis=1)        # (TB, 1)

    # Layer 2 on pooled features; block-diagonal W2 keeps the heads independent.
    num = jnp.dot(pooled, w2_ref[...], preferred_element_type=jnp.float32)
    # Exact divide (approx reciprocal dropped).  All-zero-mask rows (only batch
    # padding here) produce NaN exactly like the PyTorch reference.
    out_ref[...] = num / den + b2_ref[...]


def twin_q_forward(obs, act, mask, params1, params2, *,
                   compute_dtype=jnp.bfloat16, rows_target=2048):
    """obs: [B,S,D_obs], act: [B,S,A], mask: [B,S] f32 (0/1).

    Returns (q1, q2): [B, D_out] f32.  Samples with an all-zero mask divide by
    zero (inf/NaN), matching the PyTorch reference; batch-padding rows added
    here are sliced off before returning."""
    B, S, D_obs = obs.shape
    A = act.shape[-1]
    w1_1, b1_1, w2_1, b2_1 = params1
    w1_2, b1_2, w2_2, b2_2 = params2
    D_in = w1_1.shape[0]
    assert D_in == D_obs + A, "W1 input dim must equal D_obs + act_size"
    H = w1_1.shape[1]
    D_out = w2_1.shape[1]

    # ---- fused / split parameters (zero padding is numerically exact) --------
    Hp = _round_up(2 * H, 128)
    Op = _round_up(2 * D_out, 128)

    w1o = jnp.zeros((D_obs, Hp), compute_dtype)
    w1o = w1o.at[:, :H].set(w1_1[:D_obs].astype(compute_dtype))
    w1o = w1o.at[:, H:2 * H].set(w1_2[:D_obs].astype(compute_dtype))
    w1a = jnp.zeros((A, Hp), compute_dtype)
    w1a = w1a.at[:, :H].set(w1_1[D_obs:].astype(compute_dtype))
    w1a = w1a.at[:, H:2 * H].set(w1_2[D_obs:].astype(compute_dtype))
    b1f = jnp.zeros((1, Hp), jnp.float32)
    b1f = b1f.at[:, :H].set(b1_1).at[:, H:2 * H].set(b1_2)

    # W2/b2 stay f32: tiny, VMEM-resident once, and the pooled operand is f32.
    w2f = jnp.zeros((Hp, Op), jnp.float32)
    w2f = w2f.at[:H, :D_out].set(w2_1).at[H:2 * H, D_out:2 * D_out].set(w2_2)
    b2f = jnp.zeros((1, Op), jnp.float32)
    b2f = b2f.at[:, :D_out].set(b2_1).at[:, D_out:2 * D_out].set(b2_2)

    # ---- batch-block tiling ---------------------------------------------------
    # Aim for ~rows_target flattened rows per grid step (amortizes the ~0.35us
    # per-step overhead, fills the MXU M dim), but keep >=2 grid blocks when the
    # batch allows so v7x's two TensorCores both get work.  TB is a multiple of
    # 8 so all (8,128)-constrained blocks are sublane-aligned.
    TB = min(max(1, rows_target // max(S, 1)), max(1, (B + 1) // 2))
    TB = _round_up(TB, 8)
    Bp = _round_up(B, TB)
    TR = TB * S

    # VMEM per step (rows_target=2048, bf16 inputs): obs ~160 KiB, act/mask a few
    # KiB, f32 hidden ~1 MiB, weights <100 KiB -> ~3 MiB incl. double buffers,
    # far under 32 MiB scoped on every generation (v7x physical VMEM is 64 MiB).
    def prep(a, dtype):
        if Bp > B:
            a = jnp.pad(a, ((0, Bp - B),) + ((0, 0),) * (a.ndim - 1))
        return a.astype(dtype).reshape(Bp * S, -1)

    obs_f = prep(obs, compute_dtype)               # (Bp*S, D_obs)
    act_f = prep(act, compute_dtype)               # (Bp*S, A)
    mask_f = prep(mask[..., None], jnp.float32)    # (Bp*S, 1)

    row_map = lambda b: (b, 0)
    const = lambda b: (0, 0)

    grid_spec = pl.GridSpec(
        grid=(Bp // TB,),
        in_specs=[
            pl.BlockSpec((TR, D_obs), row_map),    # obs block (real last dim)
            pl.BlockSpec((TR, A), row_map),        # act block (real last dim)
            pl.BlockSpec((TR, 1), row_map),        # mask block
            pl.BlockSpec((D_obs, Hp), const),      # W1_obs  (VMEM-resident)
            pl.BlockSpec((A, Hp), const),          # W1_act  (VMEM-resident)
            pl.BlockSpec((1, Hp), const),          # b1
            pl.BlockSpec((Hp, Op), const),         # W2      (VMEM-resident)
            pl.BlockSpec((1, Op), const),          # b2
        ],
        out_specs=pl.BlockSpec((TB, Op), row_map), # lane-dense twin-head slab
    )

    out = pl.pallas_call(
        functools.partial(twin_q_kernel, tb=TB, s=S),
        out_shape=jax.ShapeDtypeStruct((Bp, Op), jnp.float32),
        grid_spec=grid_spec,
        compiler_params=pltpu.CompilerParams(
            dimension_semantics=("parallel",),
            vmem_limit_bytes=32 * 1024 * 1024,
        ),
    )(obs_f, act_f, mask_f, w1o, w1a, b1f, w2f, b2f)

    q = out[:B]
    return q[:, :D_out], q[:, D_out:2 * D_out]


# -----------------------------------------------------------------------------
# Plain-JAX glue replicating the tensor part of `transform`.
# -----------------------------------------------------------------------------
def transform_jax(pre_features, atoms_features):
    """pre_features: [B, S, 3+4+F+1], atoms_features: [B, n_atoms, n_basis].

    Returns obs: [B, S, 3 + n_basis + F], mask: [B, S]."""
    coords_mask = pre_features[:, :, -1]                         # [B, S]
    encode = pre_features[:, :, :3]                              # [B, S, 3]
    indices = pre_features[:, :, 3:3 + 4].astype(jnp.int32)      # [B, S, 4]
    features = pre_features[:, :, 3 + 4:-1]                      # [B, S, F]
    nbr_mask = (indices > -1).astype(jnp.float32)                # [B, S, 4]
    gathered = jnp.take_along_axis(
        atoms_features[:, None, :, :],                           # [B, 1, A, C]
        jnp.maximum(indices, 0)[:, :, :, None],                  # [B, S, 4, 1]
        axis=2,
    )                                                            # [B, S, 4, C]
    gathered = gathered * nbr_mask[..., None]
    primitives_features = gathered.sum(axis=-2)                  # [B, S, C]
    obs = jnp.concatenate([encode, primitives_features, features], axis=-1)
    return obs, coords_mask


# -----------------------------------------------------------------------------
# Pure-JAX reference for verification.
# -----------------------------------------------------------------------------
def reference_forward(obs, act, mask, params1, params2):
    x = jnp.concatenate([obs, act], axis=-1)
    def head(p):
        w1, b1, w2, b2 = p
        h = jnp.maximum(x @ w1 + b1, 0.0)
        o = h @ w2 + b2
        return jnp.sum(o * mask[..., None], axis=-2) / jnp.sum(mask, axis=-1)[..., None]
    return head(params1), head(params2)


if __name__ == "__main__":
    key = jax.random.PRNGKey(0)

    # --- meta-data sized small ----------------------------------------------
    B = 2               # batch
    S = 8               # primitives per sample (sequence)
    n_atoms = 6
    n_atom_basis = 32   # SchNet feature dim
    F = 5               # extra primitive features
    act_size = 4
    hidden = 32
    crt_size = 8        # Q-head output size
    D_obs = 3 + n_atom_basis + F
    D_in = D_obs + act_size      # == sac_input_size

    keys = jax.random.split(key, 12)

    # Synthetic SchNet per-atom embeddings (stand-in for spk SchNet output).
    atoms_features = jax.random.normal(keys[0], (B, n_atoms, n_atom_basis), jnp.float32)

    # pre_features = [encode(3) | indices(4) | features(F) | coords_mask(1)]
    encode = jax.random.normal(keys[1], (B, S, 3), jnp.float32)
    indices = jax.random.randint(keys[2], (B, S, 4), -1, n_atoms).astype(jnp.float32)
    feats = jax.random.normal(keys[3], (B, S, F), jnp.float32)
    cmask = jax.random.bernoulli(keys[4], 0.7, (B, S)).astype(jnp.float32)
    cmask = cmask.at[:, 0].set(1.0)   # guarantee non-empty mask per sample
    pre_features = jnp.concatenate([encode, indices, feats, cmask[..., None]], axis=-1)

    act = jax.random.normal(keys[5], (B, S, act_size), jnp.float32)

    # Deterministic Q-head parameters (2-layer MLP each).
    def init_head(k):
        k1, k2, k3, k4 = jax.random.split(k, 4)
        w1 = jax.random.normal(k1, (D_in, hidden), jnp.float32) * 0.1
        b1 = jax.random.normal(k2, (1, hidden), jnp.float32) * 0.01
        w2 = jax.random.normal(k3, (hidden, crt_size), jnp.float32) * 0.1
        b2 = jax.random.normal(k4, (1, crt_size), jnp.float32) * 0.01
        return (w1, b1, w2, b2)

    params1 = init_head(keys[6])
    params2 = init_head(keys[7])

    # --- forward (small batch) -------------------------------------------------
    obs, mask = transform_jax(pre_features, atoms_features)      # [B,S,D_obs], [B,S]
    r1, r2 = reference_forward(obs, act, mask, params1, params2)

    # f32 compute path: strict check.
    q1, q2 = twin_q_forward(obs, act, mask, params1, params2,
                            compute_dtype=jnp.float32)
    jax.block_until_ready((q1, q2))
    assert jnp.allclose(q1, r1, atol=1e-3, rtol=1e-3), "Q1 (f32) mismatch"
    assert jnp.allclose(q2, r2, atol=1e-3, rtol=1e-3), "Q2 (f32) mismatch"

    # bf16 compute path (default): looser tolerance for bf16 input rounding.
    q1b16, q2b16 = twin_q_forward(obs, act, mask, params1, params2)
    jax.block_until_ready((q1b16, q2b16))
    assert jnp.allclose(q1b16, r1, atol=2e-2, rtol=2e-2), "Q1 (bf16) mismatch"
    assert jnp.allclose(q2b16, r2, atol=2e-2, rtol=2e-2), "Q2 (bf16) mismatch"

    # --- forward (larger batch: multi-block grid + batch-padding path) --------
    B2 = 40
    obs2 = jax.random.normal(keys[8], (B2, S, D_obs), jnp.float32)
    act2 = jax.random.normal(keys[10], (B2, S, act_size), jnp.float32)
    m2 = jax.random.bernoulli(keys[9], 0.6, (B2, S)).astype(jnp.float32)
    m2 = m2.at[:, 0].set(1.0)

    r1b, r2b = reference_forward(obs2, act2, m2, params1, params2)

    q1f, q2f = twin_q_forward(obs2, act2, m2, params1, params2,
                              compute_dtype=jnp.float32)
    jax.block_until_ready((q1f, q2f))
    assert jnp.allclose(q1f, r1b, atol=1e-3, rtol=1e-3), "Q1 (f32, batched) mismatch"
    assert jnp.allclose(q2f, r2b, atol=1e-3, rtol=1e-3), "Q2 (f32, batched) mismatch"

    q1c, q2c = twin_q_forward(obs2, act2, m2, params1, params2)
    jax.block_until_ready((q1c, q2c))
    assert jnp.allclose(q1c, r1b, atol=2e-2, rtol=2e-2), "Q1 (bf16, batched) mismatch"
    assert jnp.allclose(q2c, r2b, atol=2e-2, rtol=2e-2), "Q2 (bf16, batched) mismatch"

    print("KERNEL_OK")
</pallas_src>

<mosaic_0001>
module attributes {stable_mosaic.version = 11 : i64} {
  func.func @twin_q_kernel(%arg0: i32, %arg1: memref<64x40xf32, #tpu.memory_space<vmem>>, %arg2: memref<64x4xf32, #tpu.memory_space<vmem>>, %arg3: memref<64x1xf32, #tpu.memory_space<vmem>>, %arg4: memref<40x128xf32, #tpu.memory_space<vmem>>, %arg5: memref<4x128xf32, #tpu.memory_space<vmem>>, %arg6: memref<1x128xf32, #tpu.memory_space<vmem>>, %arg7: memref<128x128xf32, #tpu.memory_space<vmem>>, %arg8: memref<1x128xf32, #tpu.memory_space<vmem>>, %arg9: memref<8x128xf32, #tpu.memory_space<vmem>>) attributes {dimension_semantics = [#tpu.dimension_semantics<parallel>], iteration_bounds = array<i64: 1>, scalar_prefetch = 0 : i64, scratch_operands = 0 : i64, tpu.core_type = #tpu.core_type<tc>, window_params = [{transform_indices = @transform_0, window_bounds = array<i64: 64, 40>}, {transform_indices = @transform_1, window_bounds = array<i64: 64, 4>}, {transform_indices = @transform_2, window_bounds = array<i64: 64, 1>}, {pipeline_mode = #tpu.pipeline_mode<synchronous>, transform_indices = @transform_3, window_bounds = array<i64: 40, 128>}, {pipeline_mode = #tpu.pipeline_mode<synchronous>, transform_indices = @transform_4, window_bounds = array<i64: 4, 128>}, {pipeline_mode = #tpu.pipeline_mode<synchronous>, transform_indices = @transform_5, window_bounds = array<i64: 1, 128>}, {pipeline_mode = #tpu.pipeline_mode<synchronous>, transform_indices = @transform_6, window_bounds = array<i64: 128, 128>}, {pipeline_mode = #tpu.pipeline_mode<synchronous>, transform_indices = @transform_7, window_bounds = array<i64: 1, 128>}, {transform_indices = @transform_8, window_bounds = array<i64: 8, 128>}]} {
    %c0 = arith.constant 0 : index
    %c0_0 = arith.constant 0 : index
    %0 = vector.load %arg1[%c0, %c0_0] : memref<64x40xf32, #tpu.memory_space<vmem>>, vector<64x40xf32>
    %c0_1 = arith.constant 0 : index
    %c0_2 = arith.constant 0 : index
    %1 = vector.load %arg4[%c0_1, %c0_2] : memref<40x128xf32, #tpu.memory_space<vmem>>, vector<40x128xf32>
    %cst = arith.constant dense<0.000000e+00> : vector<64x128xf32>
    %2 = tpu.matmul %0, %1, %cst {dimension_numbers = #tpu.dot_dimension_numbers<[1], [0], [0], [1], [0, 0, 1, 1], [], []>} : vector<64x40xf32>, vector<40x128xf32>, vector<64x128xf32> -> vector<64x128xf32>
    %c0_3 = arith.constant 0 : index
    %c0_4 = arith.constant 0 : index
    %3 = vector.load %arg2[%c0_3, %c0_4] : memref<64x4xf32, #tpu.memory_space<vmem>>, vector<64x4xf32>
    %c0_5 = arith.constant 0 : index
    %c0_6 = arith.constant 0 : index
    %4 = vector.load %arg5[%c0_5, %c0_6] : memref<4x128xf32, #tpu.memory_space<vmem>>, vector<4x128xf32>
    %cst_7 = arith.constant dense<0.000000e+00> : vector<64x128xf32>
    %5 = tpu.matmul %3, %4, %cst_7 {dimension_numbers = #tpu.dot_dimension_numbers<[1], [0], [0], [1], [0, 0, 1, 1], [], []>} : vector<64x4xf32>, vector<4x128xf32>, vector<64x128xf32> -> vector<64x128xf32>
    %6 = arith.addf %2, %5 : vector<64x128xf32>
    %c0_8 = arith.constant 0 : index
    %c0_9 = arith.constant 0 : index
    %7 = vector.load %arg6[%c0_8, %c0_9] : memref<1x128xf32, #tpu.memory_space<vmem>>, vector<1x128xf32>
    %8 = vector.broadcast %7 : vector<1x128xf32> to vector<64x128xf32>
    %9 = arith.addf %6, %8 : vector<64x128xf32>
    %cst_10 = arith.constant 0.000000e+00 : f32
    %10 = vector.broadcast %cst_10 : f32 to vector<64x128xf32>
    %11 = arith.maximumf %9, %10 : vector<64x128xf32>
    %c0_11 = arith.constant 0 : index
    %c0_12 = arith.constant 0 : index
    %12 = vector.load %arg3[%c0_11, %c0_12] : memref<64x1xf32, #tpu.memory_space<vmem>>, vector<64x1xf32>
    %13 = vector.broadcast %12 : vector<64x1xf32> to vector<64x128xf32>
    %14 = arith.mulf %11, %13 : vector<64x128xf32>
    %15 = vector.shape_cast %14 : vector<64x128xf32> to vector<8x8x128xf32>
    %cst_13 = arith.constant dense<0.000000e+00> : vector<8x128xf32>
    %16 = vector.multi_reduction <add>, %15, %cst_13 [1] : vector<8x8x128xf32> to vector<8x128xf32>
    %c0_14 = arith.constant 0 : index
    %c0_15 = arith.constant 0 : index
    %17 = vector.load %arg3[%c0_14, %c0_15] : memref<64x1xf32, #tpu.memory_space<vmem>>, vector<64x1xf32>
    %18 = vector.shape_cast %17 : vector<64x1xf32> to vector<8x8x1xf32>
    %cst_16 = arith.constant dense<0.000000e+00> : vector<8x1xf32>
    %19 = vector.multi_reduction <add>, %18, %cst_16 [1] : vector<8x8x1xf32> to vector<8x1xf32>
    %c0_17 = arith.constant 0 : index
    %c0_18 = arith.constant 0 : index
    %20 = vector.load %arg7[%c0_17, %c0_18] : memref<128x128xf32, #tpu.memory_space<vmem>>, vector<128x128xf32>
    %cst_19 = arith.constant dense<0.000000e+00> : vector<8x128xf32>
    %21 = tpu.matmul %16, %20, %cst_19 {dimension_numbers = #tpu.dot_dimension_numbers<[1], [0], [0], [1], [0, 0, 1, 1], [], []>} : vector<8x128xf32>, vector<128x128xf32>, vector<8x128xf32> -> vector<8x128xf32>
    %22 = vector.broadcast %19 : vector<8x1xf32> to vector<8x128xf32>
    %23 = arith.divf %21, %22 : vector<8x128xf32>
    %c0_20 = arith.constant 0 : index
    %c0_21 = arith.constant 0 : index
    %24 = vector.load %arg8[%c0_20, %c0_21] : memref<1x128xf32, #tpu.memory_space<vmem>>, vector<1x128xf32>
    %25 = vector.broadcast %24 : vector<1x128xf32> to vector<8x128xf32>
    %26 = arith.addf %23, %25 : vector<8x128xf32>
    %c0_22 = arith.constant 0 : index
    %c0_23 = arith.constant 0 : index
    %27 = vector.load %arg9[%c0_22, %c0_23] : memref<8x128xf32, #tpu.memory_space<vmem>>, vector<8x128xf32>
    tpu.vector_store %arg9[%c0_22, %c0_23], %26 {strides = array<i32>} : memref<8x128xf32, #tpu.memory_space<vmem>>, vector<8x128xf32>,
    return
  }
  func.func @transform_0(%arg0: i32) -> (i32, i32) {
    %c0_i32 = arith.constant 0 : i32
    %c0_i32_0 = arith.constant 0 : i32
    return %arg0, %c0_i32 : i32, i32
  }
  func.func @transform_1(%arg0: i32) -> (i32, i32) {
    %c0_i32 = arith.constant 0 : i32
    %c0_i32_0 = arith.constant 0 : i32
    return %arg0, %c0_i32 : i32, i32
  }
  func.func @transform_2(%arg0: i32) -> (i32, i32) {
    %c0_i32 = arith.constant 0 : i32
    %c0_i32_0 = arith.constant 0 : i32
    return %arg0, %c0_i32 : i32, i32
  }
  func.func @transform_3(%arg0: i32) -> (i32, i32) {
    %c0_i32 = arith.constant 0 : i32
    %c0_i32_0 = arith.constant 0 : i32
    %c0_i32_1 = arith.constant 0 : i32
    return %c0_i32, %c0_i32_0 : i32, i32
  }
  func.func @transform_4(%arg0: i32) -> (i32, i32) {
    %c0_i32 = arith.constant 0 : i32
    %c0_i32_0 = arith.constant 0 : i32
    %c0_i32_1 = arith.constant 0 : i32
    return %c0_i32, %c0_i32_0 : i32, i32
  }
  func.func @transform_5(%arg0: i32) -> (i32, i32) {
    %c0_i32 = arith.constant 0 : i32
    %c0_i32_0 = arith.constant 0 : i32
    %c0_i32_1 = arith.constant 0 : i32
    return %c0_i32, %c0_i32_0 : i32, i32
  }
  func.func @transform_6(%arg0: i32) -> (i32, i32) {
    %c0_i32 = arith.constant 0 : i32
    %c0_i32_0 = arith.constant 0 : i32
    %c0_i32_1 = arith.constant 0 : i32
    return %c0_i32, %c0_i32_0 : i32, i32
  }
  func.func @transform_7(%arg0: i32) -> (i32, i32) {
    %c0_i32 = arith.constant 0 : i32
    %c0_i32_0 = arith.constant 0 : i32
    %c0_i32_1 = arith.constant 0 : i32
    return %c0_i32, %c0_i32_0 : i32, i32
  }
  func.func @transform_8(%arg0: i32) -> (i32, i32) {
    %c0_i32 = arith.constant 0 : i32
    %c0_i32_0 = arith.constant 0 : i32
    return %arg0, %c0_i32 : i32, i32
  }
}

</mosaic_0001>

<llo_original>
// kernel: tpu_custom_call.1
$region0: #{tpu_custom_call.1}
  #allocation0 [shape = 'u32[]', space=smem, size = 0x4, offset = 0x4, fixed_abs, tag = 'smem constant byte address 0x4 - core index']
  #allocation1 [shape = 'u32[144,128]{1,0:T(1,128)}', space=vmem, size = 0x12000, scoped, tag = 'internal scratch']
  %s0 = inlined_call_operand.vmem [shape: f32[64,40], index: 0, kind: input, shape index: {}]
  %s1 = inlined_call_operand.vmem [shape: f32[64,4], index: 1, kind: input, shape index: {}]
  %s2 = inlined_call_operand.vmem [shape: f32[64,1], index: 2, kind: input, shape index: {}]
  %s3 = inlined_call_operand.vmem [shape: f32[40,128], index: 3, kind: input, shape index: {}]
  %s4 = inlined_call_operand.vmem [shape: f32[4,128], index: 4, kind: input, shape index: {}]
  %s5 = inlined_call_operand.vmem [shape: f32[1,128], index: 5, kind: input, shape index: {}]
  %s6 = inlined_call_operand.vmem [shape: f32[128,128], index: 6, kind: input, shape index: {}]
  %s7 = inlined_call_operand.vmem [shape: f32[1,128], index: 7, kind: input, shape index: {}]
  %s8 = inlined_call_operand.hbm [shape: f32[8,128], index: 8, kind: output, shape index: {}]
  %s9 = sld [smem:[#allocation0]]
  $region42: #{tpu_custom_call.1} parent=0
    _
  %s11 = ssub.s32 1, %s9
  %s12 = scalar_select 0, %s11, %s9
  $region1: #{tpu_custom_call.1} parent=0
    #allocation2 [shape = 'u8[4096]{0}', space=vmem, size = 0x1000, scoped, tag = 'output window, operand 0, single buffered']
    #allocation3 [shape = 's32[1]{0}', space=sflag, size = 0x4, scoped, tag = 'scoped memory for tpu_custom_call.1']
    %13 = vsyncpa [#allocation3], 0
    // Predicated region
    $region2: #{tpu_custom_call.1} parent=1 // pred_check
      _
    $region3: #{tpu_custom_call.1} parent=1 // pred_check_branch
      %15 = sbr.rel (0) target = $region5
    $region4: #{tpu_custom_call.1} parent=1 // pred_region
      _
    $region5: #{tpu_custom_call.1} parent=1 // pred_fallthru
      _
    // Predicated region
    $region6: #{tpu_custom_call.1} parent=1 // pred_check
      _
    $region7: #{tpu_custom_call.1} parent=1 // pred_check_branch
      %17 = sbr.rel (0) target = $region9
    $region8: #{tpu_custom_call.1} parent=1 // pred_region
      _
    $region9: #{tpu_custom_call.1} parent=1 // pred_fallthru
      _
    // Predicated region
    $region10: #{tpu_custom_call.1} parent=1 // pred_check
      _
    $region11: #{tpu_custom_call.1} parent=1 // pred_check_branch
      %19 = sbr.rel (0) target = $region13
    $region12: #{tpu_custom_call.1} parent=1 // pred_region
      _
    $region13: #{tpu_custom_call.1} parent=1 // pred_fallthru
      _
    // Predicated region
    $region14: #{tpu_custom_call.1} parent=1 // pred_check
      _
    $region15: #{tpu_custom_call.1} parent=1 // pred_check_branch
      %21 = sbr.rel (0) target = $region17
    $region16: #{tpu_custom_call.1} parent=1 // pred_region
      _
    $region17: #{tpu_custom_call.1} parent=1 // pred_fallthru
      _
    // Predicated region
    $region18: #{tpu_custom_call.1} parent=1 // pred_check
      _
    $region19: #{tpu_custom_call.1} parent=1 // pred_check_branch
      %23 = sbr.rel (0) target = $region21
    $region20: #{tpu_custom_call.1} parent=1 // pred_region
      _
    $region21: #{tpu_custom_call.1} parent=1 // pred_fallthru
      _
    // Predicated region
    $region22: #{tpu_custom_call.1} parent=1 // pred_check
      _
    $region23: #{tpu_custom_call.1} parent=1 // pred_check_branch
      %25 = sbr.rel (0) target = $region25
    $region24: #{tpu_custom_call.1} parent=1 // pred_region
      _
    $region25: #{tpu_custom_call.1} parent=1 // pred_fallthru
      _
    // Predicated region
    $region26: #{tpu_custom_call.1} parent=1 // pred_check
      _
    $region27: #{tpu_custom_call.1} parent=1 // pred_check_branch
      %27 = sbr.rel (0) target = $region29
    $region28: #{tpu_custom_call.1} parent=1 // pred_region
      _
    $region29: #{tpu_custom_call.1} parent=1 // pred_fallthru
      _
    // Predicated region
    $region30: #{tpu_custom_call.1} parent=1 // pred_check
      _
    $region31: #{tpu_custom_call.1} parent=1 // pred_check_branch
      %29 = sbr.rel (0) target = $region33
    $region32: #{tpu_custom_call.1} parent=1 // pred_region
      _
    $region33: #{tpu_custom_call.1} parent=1 // pred_fallthru
      _
    %v30 = vld [vmem:[%s0] sm:$0xff]
    %v31 = vld [vmem:[%s0 + $0x8] sm:$0xff]
    %v32 = vld [vmem:[%s0 + $0x10] sm:$0xff]
    %v33 = vld [vmem:[%s0 + $0x18] sm:$0xff]
    %v34 = vld [vmem:[%s0 + $0x20] sm:$0xff]
    %v35 = vld [vmem:[%s0 + $0x28] sm:$0xff]
    %v36 = vld [vmem:[%s0 + $0x30] sm:$0xff]
    %v37 = vld [vmem:[%s0 + $0x38] sm:$0xff]
    %v38 = vld [vmem:[%s3] sm:$0xff]
    %v39 = vld [vmem:[%s3 + $0x8] sm:$0xff]
    %v40 = vld [vmem:[%s3 + $0x10] sm:$0xff]
    %v41 = vld [vmem:[%s3 + $0x18] sm:$0xff]
    %v42 = vld [vmem:[%s3 + $0x20] sm:$0xff]
    %v43 = vld [vmem:[%s1] sm:$0xff]
    %v44 = vld [vmem:[%s1 + $0x8] sm:$0xff]
    %v45 = vld [vmem:[%s1 + $0x10] sm:$0xff]
    %v46 = vld [vmem:[%s1 + $0x18] sm:$0xff]
    %v47 = vld [vmem:[%s1 + $0x20] sm:$0xff]
    %v48 = vld [vmem:[%s1 + $0x28] sm:$0xff]
    %v49 = vld [vmem:[%s1 + $0x30] sm:$0xff]
    %v50 = vld [vmem:[%s1 + $0x38] sm:$0xff]
    %v51 = vld [vmem:[%s4] sm:$0xf]
    %vm52 = vcmask 31744
    %v54 = vsel %vm52, %v43, 0
    %v57 = vsel %vm52, %v44, 0
    %v60 = vsel %vm52, %v45, 0
    %v63 = vsel %vm52, %v46, 0
    %v66 = vsel %vm52, %v47, 0
    %v69 = vsel %vm52, %v48, 0
    %v72 = vsel %vm52, %v49, 0
    %v75 = vsel %vm52, %v50, 0
    %vm77 = vcmask 1043456
    %v79 = vsel %vm77, %v51, 0
    %81 = vmatprep.subr.mxu0 0.0
    %82 = vmatpush1.msra.mxu0 %v79
    %83 = vmatprep.subr.mxu0 0.0
    %84 = vmatpush1.msra.mxu0 0.0
    %85 = vmatprep.subr.mxu0 0.0
    %86 = vmatpush1.msra.mxu0 0.0
    %87 = vmatprep.subr.mxu0 0.0
    %88 = vmatpush1.msra.mxu0 0.0
    %89 = vmatprep.subr.mxu0 0.0
    %90 = vmatpush1.msra.mxu0 0.0
    %91 = vmatprep.subr.mxu0 0.0
    %92 = vmatpush1.msra.mxu0 0.0
    %93 = vmatprep.subr.mxu0 0.0
    %94 = vmatpush1.msra.mxu0 0.0
    %95 = vmatprep.subr.mxu0 0.0
    %96 = vmatpush1.msra.mxu0 0.0
    %97 = vmatprep.subr.mxu0 0.0
    %98 = vmatpush1.msra.mxu0 0.0
    %99 = vmatprep.subr.mxu0 0.0
    %100 = vmatpush1.msra.mxu0 0.0
    %101 = vmatprep.subr.mxu0 0.0
    %102 = vmatpush1.msra.mxu0 0.0
    %103 = vmatprep.subr.mxu0 0.0
    %104 = vmatpush1.msra.mxu0 0.0
    %105 = vmatprep.subr.mxu0 0.0
    %106 = vmatpush1.msra.mxu0 0.0
    %107 = vmatprep.subr.mxu0 0.0
    %108 = vmatpush1.msra.mxu0 0.0
    %109 = vmatprep.subr.mxu0 0.0
    %110 = vmatpush1.msra.mxu0 0.0
    %111 = vmatprep.subr.mxu0 0.0
    %112 = vmatpush1.msra.mxu0 0.0
    %113 = vmatprep.subr.mxu0 0.0
    %114 = vmatpush1.msra.mxu0 0.0
    %115 = vmatprep.subr.mxu0 0.0
    %116 = vmatpush1.msra.mxu0 0.0
    %117 = vmatprep.subr.mxu0 0.0
    %118 = vmatpush1.msra.mxu0 0.0
    %119 = vmatprep.subr.mxu0 0.0
    %120 = vmatpush1.msra.mxu0 0.0
    %121 = vmatprep.subr.mxu0 0.0
    %122 = vmatpush1.msra.mxu0 0.0
    %123 = vmatprep.subr.mxu0 0.0
    %124 = vmatpush1.msra.mxu0 0.0
    %125 = vmatprep.subr.mxu0 0.0
    %126 = vmatpush1.msra.mxu0 0.0
    %127 = vmatprep.subr.mxu0 0.0
    %128 = vmatpush1.msra.mxu0 0.0
    %129 = vmatprep.subr.mxu0 0.0
    %130 = vmatpush1.msra.mxu0 0.0
    %131 = vmatprep.subr.mxu0 0.0
    %132 = vmatpush1.msra.mxu0 0.0
    %133 = vmatprep.subr.mxu0 0.0
    %134 = vmatpush1.msra.mxu0 0.0
    %135 = vmatprep.subr.mxu0 0.0
    %136 = vmatpush1.msra.mxu0 0.0
    %137 = vmatprep.subr.mxu0 0.0
    %138 = vmatpush1.msra.mxu0 0.0
    %139 = vmatprep.subr.mxu0 0.0
    %140 = vmatpush1.msra.mxu0 0.0
    %141 = vmatprep.subr.mxu0 0.0
    %142 = vmatpush1.msra.mxu0 0.0
    %143 = vmatprep.subr.mxu0 0.0
    %144 = vmatpush1.msra.mxu0 0.0
    %145 = vmatprep.mubr.f32.mxu0 0.0
    %146 = vmatmul.mubr.f32.gmra.mrb[0].mxu0 %v54
    %v147 = vpop.f32.mrb[0].mxu0
    %v148 = vadd.f32 0.0, %v147
    %v149 = vpop.f32.mrb[0].mxu0
    %150 = vmatprep.mubr.f32.mxu0 0.0
    %151 = vmatmul.mubr.f32.gmra.mrb[0].mxu0 %v57
    %v152 = vpop.f32.mrb[0].mxu0
    %v153 = vadd.f32 0.0, %v152
    %v154 = vpop.f32.mrb[0].mxu0
    %155 = vmatprep.mubr.f32.mxu0 0.0
    %156 = vmatmul.mubr.f32.gmra.mrb[0].mxu0 %v60
    %v157 = vpop.f32.mrb[0].mxu0
    %v158 = vadd.f32 0.0, %v157
    %v159 = vpop.f32.mrb[0].mxu0
    %160 = vmatprep.mubr.f32.mxu0 0.0
    %161 = vmatmul.mubr.f32.gmra.mrb[0].mxu0 %v63
    %v162 = vpop.f32.mrb[0].mxu0
    %v163 = vadd.f32 0.0, %v162
    %v164 = vpop.f32.mrb[0].mxu0
    %165 = vmatprep.mubr.f32.mxu0 0.0
    %166 = vmatmul.mubr.f32.gmra.mrb[0].mxu0 %v66
    %v167 = vpop.f32.mrb[0].mxu0
    %v168 = vadd.f32 0.0, %v167
    %v169 = vpop.f32.mrb[0].mxu0
    %170 = vmatprep.mubr.f32.mxu0 0.0
    %171 = vmatmul.mubr.f32.gmra.mrb[0].mxu0 %v69
    %v172 = vpop.f32.mrb[0].mxu0
    %v173 = vadd.f32 0.0, %v172
    %v174 = vpop.f32.mrb[0].mxu0
    %175 = vmatprep.mubr.f32.mxu0 0.0
    %176 = vmatmul.mubr.f32.gmra.mrb[0].mxu0 %v72
    %v177 = vpop.f32.mrb[0].mxu0
    %v178 = vadd.f32 0.0, %v177
    %v179 = vpop.f32.mrb[0].mxu0
    %180 = vmatprep.mubr.f32.mxu0 0.0
    %181 = vmatmul.mubr.f32.gmra.mrb[0].mxu0 %v75
    %v182 = vpop.f32.mrb[0].mxu0
    %v183 = vadd.f32 0.0, %v182
    %v184 = vpop.f32.mrb[0].mxu0
    %185 = vdwg.mxu0
    %vm186 = vcmask 326656
    %v188 = vsel %vm186, %v30, 0
    %v191 = vsel %vm186, %v31, 0
    %v194 = vsel %vm186, %v32, 0
    %v197 = vsel %vm186, %v33, 0
    %v200 = vsel %vm186, %v34, 0
    %v203 = vsel %vm186, %v35, 0
    %v206 = vsel %vm186, %v36, 0
    %v209 = vsel %vm186, %v37, 0
    %211 = vmatprep.subr.mxu0 0.0
    %212 = vmatpush1.msra.mxu0 %v38
    %213 = vmatprep.subr.mxu0 0.0
    %214 = vmatpush1.msra.mxu0 %v39
    %215 = vmatprep.subr.mxu0 0.0
    %216 = vmatpush1.msra.mxu0 %v40
    %217 = vmatprep.subr.mxu0 0.0
    %218 = vmatpush1.msra.mxu0 %v41
    %219 = vmatprep.subr.mxu0 0.0
    %220 = vmatpush1.msra.mxu0 %v42
    %221 = vmatprep.subr.mxu0 0.0
    %222 = vmatpush1.msra.mxu0 0.0
    %223 = vmatprep.subr.mxu0 0.0
    %224 = vmatpush1.msra.mxu0 0.0
    %225 = vmatprep.subr.mxu0 0.0
    %226 = vmatpush1.msra.mxu0 0.0
    %227 = vmatprep.subr.mxu0 0.0
    %228 = vmatpush1.msra.mxu0 0.0
    %229 = vmatprep.subr.mxu0 0.0
    %230 = vmatpush1.msra.mxu0 0.0
    %231 = vmatprep.subr.mxu0 0.0
    %232 = vmatpush1.msra.mxu0 0.0
    %233 = vmatprep.subr.mxu0 0.0
    %234 = vmatpush1.msra.mxu0 0.0
    %235 = vmatprep.subr.mxu0 0.0
    %236 = vmatpush1.msra.mxu0 0.0
    %237 = vmatprep.subr.mxu0 0.0
    %238 = vmatpush1.msra.mxu0 0.0
    %239 = vmatprep.subr.mxu0 0.0
    %240 = vmatpush1.msra.mxu0 0.0
    %241 = vmatprep.subr.mxu0 0.0
    %242 = vmatpush1.msra.mxu0 0.0
    %243 = vmatprep.subr.mxu0 0.0
    %244 = vmatpush1.msra.mxu0 0.0
    %245 = vmatprep.subr.mxu0 0.0
    %246 = vmatpush1.msra.mxu0 0.0
    %247 = vmatprep.subr.mxu0 0.0
    %248 = vmatpush1.msra.mxu0 0.0
    %249 = vmatprep.subr.mxu0 0.0
    %250 = vmatpush1.msra.mxu0 0.0
    %251 = vmatprep.subr.mxu0 0.0
    %252 = vmatpush1.msra.mxu0 0.0
    %253 = vmatprep.subr.mxu0 0.0
    %254 = vmatpush1.msra.mxu0 0.0
    %255 = vmatprep.subr.mxu0 0.0
    %256 = vmatpush1.msra.mxu0 0.0
    %257 = vmatprep.subr.mxu0 0.0
    %258 = vmatpush1.msra.mxu0 0.0
    %259 = vmatprep.subr.mxu0 0.0
    %260 = vmatpush1.msra.mxu0 0.0
    %261 = vmatprep.subr.mxu0 0.0
    %262 = vmatpush1.msra.mxu0 0.0
    %263 = vmatprep.subr.mxu0 0.0
    %264 = vmatpush1.msra.mxu0 0.0
    %265 = vmatprep.subr.mxu0 0.0
    %266 = vmatpush1.msra.mxu0 0.0
    %267 = vmatprep.subr.mxu0 0.0
    %268 = vmatpush1.msra.mxu0 0.0
    %269 = vmatprep.subr.mxu0 0.0
    %270 = vmatpush1.msra.mxu0 0.0
    %271 = vmatprep.subr.mxu0 0.0
    %272 = vmatpush1.msra.mxu0 0.0
    %273 = vmatprep.subr.mxu0 0.0
    %274 = vmatpush1.msra.mxu0 0.0
    %275 = vmatprep.mubr.f32.mxu0 0.0
    %276 = vmatmul.mubr.f32.gmra.mrb[0].mxu0 %v188
    %v277 = vpop.f32.mrb[0].mxu0
    %v278 = vadd.f32 %v148, %v277
    %v279 = vpop.f32.mrb[0].mxu0
    %280 = vmatprep.mubr.f32.mxu0 0.0
    %281 = vmatmul.mubr.f32.gmra.mrb[0].mxu0 %v191
    %v282 = vpop.f32.mrb[0].mxu0
    %v283 = vadd.f32 %v153, %v282
    %v284 = vpop.f32.mrb[0].mxu0
    %285 = vmatprep.mubr.f32.mxu0 0.0
    %286 = vmatmul.mubr.f32.gmra.mrb[0].mxu0 %v194
    %v287 = vpop.f32.mrb[0].mxu0
    %v288 = vadd.f32 %v158, %v287
    %v289 = vpop.f32.mrb[0].mxu0
    %290 = vmatprep.mubr.f32.mxu0 0.0
    %291 = vmatmul.mubr.f32.gmra.mrb[0].mxu0 %v197
    %v292 = vpop.f32.mrb[0].mxu0
    %v293 = vadd.f32 %v163, %v292
    %v294 = vpop.f32.mrb[0].mxu0
    %295 = vmatprep.mubr.f32.mxu0 0.0
    %296 = vmatmul.mubr.f32.gmra.mrb[0].mxu0 %v200
    %v297 = vpop.f32.mrb[0].mxu0
    %v298 = vadd.f32 %v168, %v297
    %v299 = vpop.f32.mrb[0].mxu0
    %300 = vmatprep.mubr.f32.mxu0 0.0
    %301 = vmatmul.mubr.f32.gmra.mrb[0].mxu0 %v203
    %v302 = vpop.f32.mrb[0].mxu0
    %v303 = vadd.f32 %v173, %v302
    %v304 = vpop.f32.mrb[0].mxu0
    %305 = vmatprep.mubr.f32.mxu0 0.0
    %306 = vmatmul.mubr.f32.gmra.mrb[0].mxu0 %v206
    %v307 = vpop.f32.mrb[0].mxu0
    %v308 = vadd.f32 %v178, %v307
    %v309 = vpop.f32.mrb[0].mxu0
    %310 = vmatprep.mubr.f32.mxu0 0.0
    %311 = vmatmul.mubr.f32.gmra.mrb[0].mxu0 %v209
    %v312 = vpop.f32.mrb[0].mxu0
    %v313 = vadd.f32 %v183, %v312
    %v314 = vpop.f32.mrb[0].mxu0
    %315 = vdwg.mxu0
    %v316 = vld [vmem:[%s5] sm:$0x1]
    %v318 = vlaneseq
    %v319 = vshrl.u32 %v318, 7
    %v320 = vsub.s32 0, %v319
    %v321 = vrot.slane %v316, %v320
    %v323 = vadd.f32 %v278, %v321
    %v324 = vadd.f32 %v283, %v321
    %v325 = vadd.f32 %v288, %v321
    %v326 = vadd.f32 %v293, %v321
    %v327 = vadd.f32 %v298, %v321
    %v328 = vadd.f32 %v303, %v321
    %v329 = vadd.f32 %v308, %v321
    %v330 = vadd.f32 %v313, %v321
    %v331 = vmax.f32 %v323, 0.0
    %v332 = vmax.f32 %v324, 0.0
    %v333 = vmax.f32 %v325, 0.0
    %v334 = vmax.f32 %v326, 0.0
    %v335 = vmax.f32 %v327, 0.0
    %v336 = vmax.f32 %v328, 0.0
    %v337 = vmax.f32 %v329, 0.0
    %v338 = vmax.f32 %v330, 0.0
    %v339 = vld [vmem:[%s2] sm:$0xff]
    %v340 = vld [vmem:[%s2 + $0x8] sm:$0xff]
    %v341 = vld [vmem:[%s2 + $0x10] sm:$0xff]
    %v342 = vld [vmem:[%s2 + $0x18] sm:$0xff]
    %v343 = vld [vmem:[%s2 + $0x20] sm:$0xff]
    %v344 = vld [vmem:[%s2 + $0x28] sm:$0xff]
    %v345 = vld [vmem:[%s2 + $0x30] sm:$0xff]
    %v346 = vld [vmem:[%s2 + $0x38] sm:$0xff]
    %348 = vset.pattern.permute.xlu0 0
    %349 = vperm.xlu0 %348, %v339
    %v350 = vpop.permute.xlu0 %349
    %353 = vset.pattern.permute.xlu0 0
    %354 = vperm.xlu0 %353, %v340
    %v355 = vpop.permute.xlu0 %354
    %358 = vset.pattern.permute.xlu0 0
    %359 = vperm.xlu0 %358, %v341
    %v360 = vpop.permute.xlu0 %359
    %363 = vset.pattern.permute.xlu0 0
    %364 = vperm.xlu0 %363, %v342
    %v365 = vpop.permute.xlu0 %364
    %368 = vset.pattern.permute.xlu0 0
    %369 = vperm.xlu0 %368, %v343
    %v370 = vpop.permute.xlu0 %369
    %373 = vset.pattern.permute.xlu0 0
    %374 = vperm.xlu0 %373, %v344
    %v375 = vpop.permute.xlu0 %374
    %378 = vset.pattern.permute.xlu0 0
    %379 = vperm.xlu0 %378, %v345
    %v380 = vpop.permute.xlu0 %379
    %383 = vset.pattern.permute.xlu0 0
    %384 = vperm.xlu0 %383, %v346
    %v385 = vpop.permute.xlu0 %384
    %v387 = vmul.f32 %v331, %v350
    %v388 = vmul.f32 %v332, %v355
    %v389 = vmul.f32 %v333, %v360
    %v390 = vmul.f32 %v334, %v365
    %v391 = vmul.f32 %v335, %v370
    %v392 = vmul.f32 %v336, %v375
    %v393 = vmul.f32 %v337, %v380
    %v394 = vmul.f32 %v338, %v385
    %v395 = vrot.slane %v387, 4
    %v396 = vadd.f32 %v387, %v395
    %v397 = vrot.slane %v396, 2
    %v398 = vadd.f32 %v396, %v397
    %v399 = vrot.slane %v398, 1
    %v400 = vadd.f32 %v398, %v399
    %v401 = vrot.slane %v388, 4
    %v402 = vadd.f32 %v388, %v401
    %v403 = vrot.slane %v402, 2
    %v404 = vadd.f32 %v402, %v403
    %v405 = vrot.slane %v404, 1
    %v406 = vadd.f32 %v404, %v405
    %v407 = vrot.slane %v389, 4
    %v408 = vadd.f32 %v389, %v407
    %v409 = vrot.slane %v408, 2
    %v410 = vadd.f32 %v408, %v409
    %v411 = vrot.slane %v410, 1
    %v412 = vadd.f32 %v410, %v411
    %v413 = vrot.slane %v390, 4
    %v414 = vadd.f32 %v390, %v413
    %v415 = vrot.slane %v414, 2
    %v416 = vadd.f32 %v414, %v415
    %v417 = vrot.slane %v416, 1
    %v418 = vadd.f32 %v416, %v417
    %v419 = vrot.slane %v391, 4
    %v420 = vadd.f32 %v391, %v419
    %v421 = vrot.slane %v420, 2
    %v422 = vadd.f32 %v420, %v421
    %v423 = vrot.slane %v422, 1
    %v424 = vadd.f32 %v422, %v423
    %v425 = vrot.slane %v392, 4
    %v426 = vadd.f32 %v392, %v425
    %v427 = vrot.slane %v426, 2
    %v428 = vadd.f32 %v426, %v427
    %v429 = vrot.slane %v428, 1
    %v430 = vadd.f32 %v428, %v429
    %v431 = vrot.slane %v393, 4
    %v432 = vadd.f32 %v393, %v431
    %v433 = vrot.slane %v432, 2
    %v434 = vadd.f32 %v432, %v433
    %v435 = vrot.slane %v434, 1
    %v436 = vadd.f32 %v434, %v435
    %v437 = vrot.slane %v394, 4
    %v438 = vadd.f32 %v394, %v437
    %v439 = vrot.slane %v438, 2
    %v440 = vadd.f32 %v438, %v439
    %v441 = vrot.slane %v440, 1
    %v442 = vadd.f32 %v440, %v441
    %vm443 = vcmask 7168
    %v444 = vsel %vm443, %v339, 0.0
    %v445 = vrot.slane %v444, 4
    %v446 = vadd.f32 %v444, %v445
    %v447 = vrot.slane %v446, 2
    %v448 = vadd.f32 %v446, %v447
    %v449 = vrot.slane %v448, 1
    %v450 = vadd.f32 %v448, %v449
    %v451 = vsel %vm443, %v340, 0.0
    %v452 = vrot.slane %v451, 4
    %v453 = vadd.f32 %v451, %v452
    %v454 = vrot.slane %v453, 2
    %v455 = vadd.f32 %v453, %v454
    %v456 = vrot.slane %v455, 1
    %v457 = vadd.f32 %v455, %v456
    %v458 = vsel %vm443, %v341, 0.0
    %v459 = vrot.slane %v458, 4
    %v460 = vadd.f32 %v458, %v459
    %v461 = vrot.slane %v460, 2
    %v462 = vadd.f32 %v460, %v461
    %v463 = vrot.slane %v462, 1
    %v464 = vadd.f32 %v462, %v463
    %v465 = vsel %vm443, %v342, 0.0
    %v466 = vrot.slane %v465, 4
    %v467 = vadd.f32 %v465, %v466
    %v468 = vrot.slane %v467, 2
    %v469 = vadd.f32 %v467, %v468
    %v470 = vrot.slane %v469, 1
    %v471 = vadd.f32 %v469, %v470
    %v472 = vsel %vm443, %v343, 0.0
    %v473 = vrot.slane %v472, 4
    %v474 = vadd.f32 %v472, %v473
    %v475 = vrot.slane %v474, 2
    %v476 = vadd.f32 %v474, %v475
    %v477 = vrot.slane %v476, 1
    %v478 = vadd.f32 %v476, %v477
    %v479 = vsel %vm443, %v344, 0.0
    %v480 = vrot.slane %v479, 4
    %v481 = vadd.f32 %v479, %v480
    %v482 = vrot.slane %v481, 2
    %v483 = vadd.f32 %v481, %v482
    %v484 = vrot.slane %v483, 1
    %v485 = vadd.f32 %v483, %v484
    %v486 = vsel %vm443, %v345, 0.0
    %v487 = vrot.slane %v486, 4
    %v488 = vadd.f32 %v486, %v487
    %v489 = vrot.slane %v488, 2
    %v490 = vadd.f32 %v488, %v489
    %v491 = vrot.slane %v490, 1
    %v492 = vadd.f32 %v490, %v491
    %v493 = vsel %vm443, %v346, 0.0
    %v494 = vrot.slane %v493, 4
    %v495 = vadd.f32 %v493, %v494
    %v496 = vrot.slane %v495, 2
    %v497 = vadd.f32 %v495, %v496
    %v498 = vrot.slane %v497, 1
    %v499 = vadd.f32 %v497, %v498
    %v500 = vld [vmem:[%s6] sm:$0xff]
    %v501 = vld [vmem:[%s6 + $0x8] sm:$0xff]
    %v502 = vld [vmem:[%s6 + $0x10] sm:$0xff]
    %v503 = vld [vmem:[%s6 + $0x18] sm:$0xff]
    %v504 = vld [vmem:[%s6 + $0x20] sm:$0xff]
    %v505 = vld [vmem:[%s6 + $0x28] sm:$0xff]
    %v506 = vld [vmem:[%s6 + $0x30] sm:$0xff]
    %v507 = vld [vmem:[%s6 + $0x38] sm:$0xff]
    %v508 = vld [vmem:[%s6 + $0x40] sm:$0xff]
    %v509 = vld [vmem:[%s6 + $0x48] sm:$0xff]
    %v510 = vld [vmem:[%s6 + $0x50] sm:$0xff]
    %v511 = vld [vmem:[%s6 + $0x58] sm:$0xff]
    %v512 = vld [vmem:[%s6 + $0x60] sm:$0xff]
    %v513 = vld [vmem:[%s6 + $0x68] sm:$0xff]
    %v514 = vld [vmem:[%s6 + $0x70] sm:$0xff]
    %v515 = vld [vmem:[%s6 + $0x78] sm:$0xff]
    %vm524 = vcmask 1041409
    %v525 = vsel %vm524, %v406, %v400
    %vm526 = vcmask 1042434
    %v527 = vsel %vm526, %v412, %v525
    %vm528 = vcmask 1043459
    %v529 = vsel %vm528, %v418, %v527
    %vm530 = vcmask 1044484
    %v531 = vsel %vm530, %v424, %v529
    %vm532 = vcmask 1045509
    %v533 = vsel %vm532, %v430, %v531
    %vm534 = vcmask 1046534
    %v535 = vsel %vm534, %v436, %v533
    %vm536 = vcmask 1047559
    %v537 = vsel %vm536, %v442, %v535
    %539 = vmatprep.subr.mxu0 0.0
    %540 = vmatpush1.msra.mxu0 %v500
    %541 = vmatprep.subr.mxu0 0.0
    %542 = vmatpush1.msra.mxu0 %v501
    %543 = vmatprep.subr.mxu0 0.0
    %544 = vmatpush1.msra.mxu0 %v502
    %545 = vmatprep.subr.mxu0 0.0
    %546 = vmatpush1.msra.mxu0 %v503
    %547 = vmatprep.subr.mxu0 0.0
    %548 = vmatpush1.msra.mxu0 %v504
    %549 = vmatprep.subr.mxu0 0.0
    %550 = vmatpush1.msra.mxu0 %v505
    %551 = vmatprep.subr.mxu0 0.0
    %552 = vmatpush1.msra.mxu0 %v506
    %553 = vmatprep.subr.mxu0 0.0
    %554 = vmatpush1.msra.mxu0 %v507
    %555 = vmatprep.subr.mxu0 0.0
    %556 = vmatpush1.msra.mxu0 %v508
    %557 = vmatprep.subr.mxu0 0.0
    %558 = vmatpush1.msra.mxu0 %v509
    %559 = vmatprep.subr.mxu0 0.0
    %560 = vmatpush1.msra.mxu0 %v510
    %561 = vmatprep.subr.mxu0 0.0
    %562 = vmatpush1.msra.mxu0 %v511
    %563 = vmatprep.subr.mxu0 0.0
    %564 = vmatpush1.msra.mxu0 %v512
    %565 = vmatprep.subr.mxu0 0.0
    %566 = vmatpush1.msra.mxu0 %v513
    %567 = vmatprep.subr.mxu0 0.0
    %568 = vmatpush1.msra.mxu0 %v514
    %569 = vmatprep.subr.mxu0 0.0
    %570 = vmatpush1.msra.mxu0 %v515
    %571 = vmatprep.subr.mxu0 0.0
    %572 = vmatpush1.msra.mxu0 0.0
    %573 = vmatprep.subr.mxu0 0.0
    %574 = vmatpush1.msra.mxu0 0.0
    %575 = vmatprep.subr.mxu0 0.0
    %576 = vmatpush1.msra.mxu0 0.0
    %577 = vmatprep.subr.mxu0 0.0
    %578 = vmatpush1.msra.mxu0 0.0
    %579 = vmatprep.subr.mxu0 0.0
    %580 = vmatpush1.msra.mxu0 0.0
    %581 = vmatprep.subr.mxu0 0.0
    %582 = vmatpush1.msra.mxu0 0.0
    %583 = vmatprep.subr.mxu0 0.0
    %584 = vmatpush1.msra.mxu0 0.0
    %585 = vmatprep.subr.mxu0 0.0
    %586 = vmatpush1.msra.mxu0 0.0
    %587 = vmatprep.subr.mxu0 0.0
    %588 = vmatpush1.msra.mxu0 0.0
    %589 = vmatprep.subr.mxu0 0.0
    %590 = vmatpush1.msra.mxu0 0.0
    %591 = vmatprep.subr.mxu0 0.0
    %592 = vmatpush1.msra.mxu0 0.0
    %593 = vmatprep.subr.mxu0 0.0
    %594 = vmatpush1.msra.mxu0 0.0
    %595 = vmatprep.subr.mxu0 0.0
    %596 = vmatpush1.msra.mxu0 0.0
    %597 = vmatprep.subr.mxu0 0.0
    %598 = vmatpush1.msra.mxu0 0.0
    %599 = vmatprep.subr.mxu0 0.0
    %600 = vmatpush1.msra.mxu0 0.0
    %601 = vmatprep.subr.mxu0 0.0
    %602 = vmatpush1.msra.mxu0 0.0
    %603 = vmatprep.mubr.f32.mxu0 0.0
    %604 = vmatmul.mubr.f32.gmra.mrb[0].mxu0 %v537
    %v605 = vpop.f32.mrb[0].mxu0
    %v606 = vadd.f32 0.0, %v605
    %v607 = vpop.f32.mrb[0].mxu0
    %608 = vdwg.mxu0
    %610 = vset.pattern.permute.xlu0 0
    %611 = vperm.xlu0 %610, %v450
    %v612 = vpop.permute.xlu0 %611
    %614 = vset.pattern.permute.xlu0 0
    %615 = vperm.xlu0 %614, %v457
    %v616 = vpop.permute.xlu0 %615
    %618 = vset.pattern.permute.xlu0 0
    %619 = vperm.xlu0 %618, %v464
    %v620 = vpop.permute.xlu0 %619
    %622 = vset.pattern.permute.xlu0 0
    %623 = vperm.xlu0 %622, %v471
    %v624 = vpop.permute.xlu0 %623
    %626 = vset.pattern.permute.xlu0 0
    %627 = vperm.xlu0 %626, %v478
    %v628 = vpop.permute.xlu0 %627
    %630 = vset.pattern.permute.xlu0 0
    %631 = vperm.xlu0 %630, %v485
    %v632 = vpop.permute.xlu0 %631
    %634 = vset.pattern.permute.xlu0 0
    %635 = vperm.xlu0 %634, %v492
    %v636 = vpop.permute.xlu0 %635
    %638 = vset.pattern.permute.xlu0 0
    %639 = vperm.xlu0 %638, %v499
    %v640 = vpop.permute.xlu0 %639
    %v641 = vsel %vm524, %v616, %v612
    %v642 = vsel %vm526, %v620, %v641
    %v643 = vsel %vm528, %v624, %v642
    %v644 = vsel %vm530, %v628, %v643
    %v645 = vsel %vm532, %v632, %v644
    %v646 = vsel %vm534, %v636, %v645
    %v647 = vsel %vm536, %v640, %v646
    %v649 = vrcp.pop %v647
    %v650 = vmul.f32 %v606, %v649
    %v651 = vld [vmem:[%s7] sm:$0x1]
    %v653 = vlaneseq
    %v654 = vshrl.u32 %v653, 7
    %v655 = vsub.s32 0, %v654
    %v656 = vrot.slane %v651, %v655
    %v658 = vadd.f32 %v650, %v656
    %659 = vst [vmem:[#allocation2] sm:$0xff] %v658
    // Predicated region
    $region34: #{tpu_custom_call.1} parent=1 // pred_check
      _
    $region35: #{tpu_custom_call.1} parent=1 // pred_check_branch
      %661 = sbr.rel (0) target = $region37
    $region36: #{tpu_custom_call.1} parent=1 // pred_region
      %s663 = ssub.s32 128, 128
      %664 = vsyncadd [#allocation3], %s663
      %s666 = sshll.u32 [#allocation2], 4
      %s667 = int_to_ptr.vmem [resolvable:$true] %s666
      %669 = dma.vmem_to_hbm [thread:$0]  %s667, 128, %s8, [#allocation3]
    $region37: #{tpu_custom_call.1} parent=1 // pred_fallthru
      _
    // Predicated region
    $region38: #{tpu_custom_call.1} parent=1 // pred_check
      _
    $region39: #{tpu_custom_call.1} parent=1 // pred_check_branch
      %671 = sbr.rel (0) target = $region41
    $region40: #{tpu_custom_call.1} parent=1 // pred_region
      %672 = dma.done [#allocation3], 128
    $region41: #{tpu_custom_call.1} parent=1 // pred_fallthru
      _
    %673 = vsyncpa [#allocation3], 1

</llo_original>
